<compile_context>
chip_gen: v6e
topology: v6e:2x2x1
jax: 0.10.0
libtpu: 0.0.40
codegen_flags: <defaults>
</compile_context>

<pallas_src>
import functools
import math

import jax
import jax.numpy as jnp
from jax.experimental import pallas as pl
from jax.experimental.pallas import tpu as pltpu


def _conv2d_kernel(w_ref, x_ref, o_ref, xpad_ref, patch_ref, *,
                   n, h, w, kh, kw, cin, cout, k_pad):
    # w_ref:     (8, k_pad)      f32 VMEM  weight tile; row co, col k=(ci*KH+ki)*KW+kj,
    #                                       col k_dim = bias, rest zero.
    # x_ref:     (Cin, P)        f32 VMEM  lane-dense input slab, P = N*H*W.
    # o_ref:     (8, P)          f32 VMEM  lane-dense output slab (rows 6,7 junk).
    # xpad_ref:  (Cin, P_pad)    f32 VMEM  scratch: input + zeroed shift tail.
    # patch_ref: (k_pad, P)      f32 VMEM  scratch: im2col patch matrix.
    p = n * h * w
    p_pad = xpad_ref.shape[1]
    k_dim = cin * kh * kw

    # In-kernel zero pad of the lane tail (replaces the wrapper jnp.pad).
    xpad_ref[:, :p] = x_ref[...]
    if p_pad > p:
        xpad_ref[:, p:] = jnp.zeros((cin, p_pad - p), dtype=jnp.float32)

    # im2col: patch row k = (ci*KH + ki)*KW + kj is the flattened input of channel ci
    # shifted left by ki*W + kj lanes.  Windows that spill past a row / image read
    # padding or neighbor-image data only at output positions the wrapper discards.
    for ci in range(cin):
        for ki in range(kh):
            for kj in range(kw):
                kidx = (ci * kh + ki) * kw + kj
                shift = ki * w + kj
                patch_ref[kidx:kidx + 1, :] = xpad_ref[ci:ci + 1, pl.ds(shift, p)]

    # Ones row: multiplies the bias column of w_ref, folding the bias into the dot.
    patch_ref[k_dim:k_dim + 1, :] = jnp.ones((1, p), dtype=jnp.float32)
    # Zero the remaining pad rows so uninitialized scratch (possible NaNs) never
    # enters the MXU (0 * NaN would poison valid outputs).
    if k_dim + 1 < k_pad:
        patch_ref[k_dim + 1:, :] = jnp.zeros((k_pad - k_dim - 1, p), dtype=jnp.float32)

    # One MXU matmul replaces the previous 162 scalar-FMA VPU updates; the (8, P)
    # result is stored directly (no concatenate / sublane repack epilogue).
    o_ref[...] = jnp.dot(w_ref[...], patch_ref[...],
                         preferred_element_type=jnp.float32).astype(o_ref.dtype)


@functools.partial(jax.jit, static_argnames=("stride", "padding"))
def conv2d_pallas(x_nchw, w_oihw, bias, *, stride=1, padding=0):
    """VALID (pad=0), stride-1 2D convolution matching torch.nn.Conv2d semantics."""
    assert stride == 1 and padding == 0  # ConvNet.conv1 is hard-wired to these.
    n, cin, h, w = x_nchw.shape
    cout, cin_w, kh, kw = w_oihw.shape
    assert cin == cin_w
    hout, wout = h - kh + 1, w - kw + 1

    p = n * h * w
    k_dim = cin * kh * kw
    k_pad = 32                       # 27 -> 32 sublanes (one f32 sublane group x4)
    cout_pad = 8                     # 6 -> 8 sublanes: unmasked (8, P) result store
    max_shift = (kh - 1) * w + (kw - 1)
    p_pad = ((p + max_shift + 127) // 128) * 128   # padded lane count, x128

    # Glue (kept minimal): NCHW -> lane-dense (Cin, N*H*W) slab; no wrapper padding.
    x2d = jnp.transpose(x_nchw, (1, 0, 2, 3)).reshape(cin, p).astype(jnp.float32)

    # (8, 32) weight tile: rows = Cout (padded), cols = flattened (ci, ki, kj) taps,
    # plus a bias column at k_dim; all other entries zero.
    w_mat = w_oihw.reshape(cout, k_dim).astype(jnp.float32)
    w_tile = jnp.zeros((cout_pad, k_pad), jnp.float32)
    w_tile = w_tile.at[:cout, :k_dim].set(w_mat)
    w_tile = w_tile.at[:cout, k_dim].set(bias.astype(jnp.float32))

    kernel = functools.partial(
        _conv2d_kernel, n=n, h=h, w=w, kh=kh, kw=kw, cin=cin, cout=cout, k_pad=k_pad)

    out2d = pl.pallas_call(
        kernel,
        out_shape=jax.ShapeDtypeStruct((cout_pad, p), jnp.float32),
        in_specs=[
            pl.BlockSpec(memory_space=pltpu.MemorySpace.VMEM),   # weight tile
            pl.BlockSpec(memory_space=pltpu.MemorySpace.VMEM),   # input slab
        ],
        out_specs=pl.BlockSpec(memory_space=pltpu.MemorySpace.VMEM),
        scratch_shapes=[
            pltpu.VMEM((cin, p_pad), jnp.float32),   # zero-padded input rows
            pltpu.VMEM((k_pad, p), jnp.float32),     # im2col patch matrix
        ],
        cost_estimate=pl.CostEstimate(
            flops=2 * cout * k_dim * p,
            transcendentals=0,
            bytes_accessed=(cin * p + cout_pad * k_pad + cout_pad * p) * 4,
        ),
    )(w_tile, x2d)

    # Glue: drop the Cout padding, keep only valid output positions, restore NCHW.
    # TODO(synk): ConvNet.forward returns the conv output directly, so there is no
    # downstream op to fuse; if a ReLU/pool stage is added, fuse it here and mask
    # the invalid (cross-boundary) lanes before any reduction.
    out = out2d[:cout].reshape(cout, n, h, w)[:, :, :hout, :wout]
    return jnp.transpose(out, (1, 0, 2, 3)).astype(x_nchw.dtype)


if __name__ == "__main__":
    key = jax.random.PRNGKey(0)
    kx, kw_, kb = jax.random.split(key, 3)

    # Shapes implied by ConvNet: Conv2d(3 -> 6, k=3).  Small input: (2, 3, 16, 16).
    N, CIN, H, W = 2, 3, 16, 16
    COUT, KH, KW = 6, 3, 3

    x = jax.random.normal(kx, (N, CIN, H, W), dtype=jnp.float32)

    # Deterministic init mimicking torch's kaiming-uniform defaults (fan_in = Cin*KH*KW).
    fan_in = CIN * KH * KW
    bound = 1.0 / math.sqrt(fan_in)
    weight = jax.random.uniform(kw_, (COUT, CIN, KH, KW),
                                minval=-bound, maxval=bound, dtype=jnp.float32)
    bias = jax.random.uniform(kb, (COUT,), minval=-bound, maxval=bound,
                              dtype=jnp.float32)

    out = conv2d_pallas(x, weight, bias)
    out = jax.block_until_ready(out)

    # Reference check against XLA's conv (same NCHW/OIHW semantics as PyTorch).
    ref = jax.lax.conv_general_dilated(
        x, weight, window_strides=(1, 1), padding="VALID",
        dimension_numbers=("NCHW", "OIHW", "NCHW"))
    ref = ref + bias[None, :, None, None]

    assert out.shape == (N, COUT, H - KH + 1, W - KW + 1), out.shape
    assert jnp.allclose(out, ref, atol=1e-5, rtol=1e-5), float(jnp.max(jnp.abs(out - ref)))

    print("KERNEL_OK")
</pallas_src>

<mosaic_0001>
module attributes {stable_mosaic.version = 11 : i64} {
  func.func @_conv2d_kernel(%arg0: memref<8x32xf32, #tpu.memory_space<vmem>>, %arg1: memref<3x512xf32, #tpu.memory_space<vmem>>, %arg2: memref<8x512xf32, #tpu.memory_space<vmem>>, %arg3: memref<3x640xf32, #tpu.memory_space<vmem>>, %arg4: memref<32x512xf32, #tpu.memory_space<vmem>>) attributes {dimension_semantics = [], scalar_prefetch = 0 : i64, scratch_operands = 2 : i64, tpu.core_type = #tpu.core_type<tc>} {
    %c0 = arith.constant 0 : index
    %c0_0 = arith.constant 0 : index
    %0 = vector.load %arg1[%c0, %c0_0] : memref<3x512xf32, #tpu.memory_space<vmem>>, vector<3x512xf32>
    %c0_1 = arith.constant 0 : index
    %c0_2 = arith.constant 0 : index
    %1 = vector.load %arg3[%c0_1, %c0_2] : memref<3x640xf32, #tpu.memory_space<vmem>>, vector<3x512xf32>
    tpu.vector_store %arg3[%c0_1, %c0_2], %0 {strides = array<i32>} : memref<3x640xf32, #tpu.memory_space<vmem>>, vector<3x512xf32>,
    %cst = arith.constant 0.000000e+00 : f32
    %2 = vector.broadcast %cst : f32 to vector<3x128xf32>
    %c0_3 = arith.constant 0 : index
    %c512 = arith.constant 512 : index
    %3 = vector.load %arg3[%c0_3, %c512] : memref<3x640xf32, #tpu.memory_space<vmem>>, vector<3x128xf32>
    tpu.vector_store %arg3[%c0_3, %c512], %2 {strides = array<i32>} : memref<3x640xf32, #tpu.memory_space<vmem>>, vector<3x128xf32>,
    %c0_4 = arith.constant 0 : index
    %c0_5 = arith.constant 0 : index
    %4 = vector.load %arg3[%c0_4, %c0_5] : memref<3x640xf32, #tpu.memory_space<vmem>>, vector<1x512xf32>
    %c0_6 = arith.constant 0 : index
    %c0_7 = arith.constant 0 : index
    %5 = vector.load %arg4[%c0_6, %c0_7] : memref<32x512xf32, #tpu.memory_space<vmem>>, vector<1x512xf32>
    tpu.vector_store %arg4[%c0_6, %c0_7], %4 {strides = array<i32>} : memref<32x512xf32, #tpu.memory_space<vmem>>, vector<1x512xf32>,
    %c0_8 = arith.constant 0 : index
    %c1 = arith.constant 1 : index
    %6 = vector.load %arg3[%c0_8, %c1] : memref<3x640xf32, #tpu.memory_space<vmem>>, vector<1x512xf32>
    %c1_9 = arith.constant 1 : index
    %c0_10 = arith.constant 0 : index
    %7 = vector.load %arg4[%c1_9, %c0_10] : memref<32x512xf32, #tpu.memory_space<vmem>>, vector<1x512xf32>
    tpu.vector_store %arg4[%c1_9, %c0_10], %6 {strides = array<i32>} : memref<32x512xf32, #tpu.memory_space<vmem>>, vector<1x512xf32>,
    %c0_11 = arith.constant 0 : index
    %c2 = arith.constant 2 : index
    %8 = vector.load %arg3[%c0_11, %c2] : memref<3x640xf32, #tpu.memory_space<vmem>>, vector<1x512xf32>
    %c2_12 = arith.constant 2 : index
    %c0_13 = arith.constant 0 : index
    %9 = vector.load %arg4[%c2_12, %c0_13] : memref<32x512xf32, #tpu.memory_space<vmem>>, vector<1x512xf32>
    tpu.vector_store %arg4[%c2_12, %c0_13], %8 {strides = array<i32>} : memref<32x512xf32, #tpu.memory_space<vmem>>, vector<1x512xf32>,
    %c0_14 = arith.constant 0 : index
    %c16 = arith.constant 16 : index
    %10 = vector.load %arg3[%c0_14, %c16] : memref<3x640xf32, #tpu.memory_space<vmem>>, vector<1x512xf32>
    %c3 = arith.constant 3 : index
    %c0_15 = arith.constant 0 : index
    %11 = vector.load %arg4[%c3, %c0_15] : memref<32x512xf32, #tpu.memory_space<vmem>>, vector<1x512xf32>
    tpu.vector_store %arg4[%c3, %c0_15], %10 {strides = array<i32>} : memref<32x512xf32, #tpu.memory_space<vmem>>, vector<1x512xf32>,
    %c0_16 = arith.constant 0 : index
    %c17 = arith.constant 17 : index
    %12 = vector.load %arg3[%c0_16, %c17] : memref<3x640xf32, #tpu.memory_space<vmem>>, vector<1x512xf32>
    %c4 = arith.constant 4 : index
    %c0_17 = arith.constant 0 : index
    %13 = vector.load %arg4[%c4, %c0_17] : memref<32x512xf32, #tpu.memory_space<vmem>>, vector<1x512xf32>
    tpu.vector_store %arg4[%c4, %c0_17], %12 {strides = array<i32>} : memref<32x512xf32, #tpu.memory_space<vmem>>, vector<1x512xf32>,
    %c0_18 = arith.constant 0 : index
    %c18 = arith.constant 18 : index
    %14 = vector.load %arg3[%c0_18, %c18] : memref<3x640xf32, #tpu.memory_space<vmem>>, vector<1x512xf32>
    %c5 = arith.constant 5 : index
    %c0_19 = arith.constant 0 : index
    %15 = vector.load %arg4[%c5, %c0_19] : memref<32x512xf32, #tpu.memory_space<vmem>>, vector<1x512xf32>
    tpu.vector_store %arg4[%c5, %c0_19], %14 {strides = array<i32>} : memref<32x512xf32, #tpu.memory_space<vmem>>, vector<1x512xf32>,
    %c0_20 = arith.constant 0 : index
    %c32 = arith.constant 32 : index
    %16 = vector.load %arg3[%c0_20, %c32] : memref<3x640xf32, #tpu.memory_space<vmem>>, vector<1x512xf32>
    %c6 = arith.constant 6 : index
    %c0_21 = arith.constant 0 : index
    %17 = vector.load %arg4[%c6, %c0_21] : memref<32x512xf32, #tpu.memory_space<vmem>>, vector<1x512xf32>
    tpu.vector_store %arg4[%c6, %c0_21], %16 {strides = array<i32>} : memref<32x512xf32, #tpu.memory_space<vmem>>, vector<1x512xf32>,
    %c0_22 = arith.constant 0 : index
    %c33 = arith.constant 33 : index
    %18 = vector.load %arg3[%c0_22, %c33] : memref<3x640xf32, #tpu.memory_space<vmem>>, vector<1x512xf32>
    %c7 = arith.constant 7 : index
    %c0_23 = arith.constant 0 : index
    %19 = vector.load %arg4[%c7, %c0_23] : memref<32x512xf32, #tpu.memory_space<vmem>>, vector<1x512xf32>
    tpu.vector_store %arg4[%c7, %c0_23], %18 {strides = array<i32>} : memref<32x512xf32, #tpu.memory_space<vmem>>, vector<1x512xf32>,
    %c0_24 = arith.constant 0 : index
    %c34 = arith.constant 34 : index
    %20 = vector.load %arg3[%c0_24, %c34] : memref<3x640xf32, #tpu.memory_space<vmem>>, vector<1x512xf32>
    %c8 = arith.constant 8 : index
    %c0_25 = arith.constant 0 : index
    %21 = vector.load %arg4[%c8, %c0_25] : memref<32x512xf32, #tpu.memory_space<vmem>>, vector<1x512xf32>
    tpu.vector_store %arg4[%c8, %c0_25], %20 {strides = array<i32>} : memref<32x512xf32, #tpu.memory_space<vmem>>, vector<1x512xf32>,
    %c1_26 = arith.constant 1 : index
    %c0_27 = arith.constant 0 : index
    %22 = vector.load %arg3[%c1_26, %c0_27] : memref<3x640xf32, #tpu.memory_space<vmem>>, vector<1x512xf32>
    %c9 = arith.constant 9 : index
    %c0_28 = arith.constant 0 : index
    %23 = vector.load %arg4[%c9, %c0_28] : memref<32x512xf32, #tpu.memory_space<vmem>>, vector<1x512xf32>
    tpu.vector_store %arg4[%c9, %c0_28], %22 {strides = array<i32>} : memref<32x512xf32, #tpu.memory_space<vmem>>, vector<1x512xf32>,
    %c1_29 = arith.constant 1 : index
    %c1_30 = arith.constant 1 : index
    %24 = vector.load %arg3[%c1_29, %c1_30] : memref<3x640xf32, #tpu.memory_space<vmem>>, vector<1x512xf32>
    %c10 = arith.constant 10 : index
    %c0_31 = arith.constant 0 : index
    %25 = vector.load %arg4[%c10, %c0_31] : memref<32x512xf32, #tpu.memory_space<vmem>>, vector<1x512xf32>
    tpu.vector_store %arg4[%c10, %c0_31], %24 {strides = array<i32>} : memref<32x512xf32, #tpu.memory_space<vmem>>, vector<1x512xf32>,
    %c1_32 = arith.constant 1 : index
    %c2_33 = arith.constant 2 : index
    %26 = vector.load %arg3[%c1_32, %c2_33] : memref<3x640xf32, #tpu.memory_space<vmem>>, vector<1x512xf32>
    %c11 = arith.constant 11 : index
    %c0_34 = arith.constant 0 : index
    %27 = vector.load %arg4[%c11, %c0_34] : memref<32x512xf32, #tpu.memory_space<vmem>>, vector<1x512xf32>
    tpu.vector_store %arg4[%c11, %c0_34], %26 {strides = array<i32>} : memref<32x512xf32, #tpu.memory_space<vmem>>, vector<1x512xf32>,
    %c1_35 = arith.constant 1 : index
    %c16_36 = arith.constant 16 : index
    %28 = vector.load %arg3[%c1_35, %c16_36] : memref<3x640xf32, #tpu.memory_space<vmem>>, vector<1x512xf32>
    %c12 = arith.constant 12 : index
    %c0_37 = arith.constant 0 : index
    %29 = vector.load %arg4[%c12, %c0_37] : memref<32x512xf32, #tpu.memory_space<vmem>>, vector<1x512xf32>
    tpu.vector_store %arg4[%c12, %c0_37], %28 {strides = array<i32>} : memref<32x512xf32, #tpu.memory_space<vmem>>, vector<1x512xf32>,
    %c1_38 = arith.constant 1 : index
    %c17_39 = arith.constant 17 : index
    %30 = vector.load %arg3[%c1_38, %c17_39] : memref<3x640xf32, #tpu.memory_space<vmem>>, vector<1x512xf32>
    %c13 = arith.constant 13 : index
    %c0_40 = arith.constant 0 : index
    %31 = vector.load %arg4[%c13, %c0_40] : memref<32x512xf32, #tpu.memory_space<vmem>>, vector<1x512xf32>
    tpu.vector_store %arg4[%c13, %c0_40], %30 {strides = array<i32>} : memref<32x512xf32, #tpu.memory_space<vmem>>, vector<1x512xf32>,
    %c1_41 = arith.constant 1 : index
    %c18_42 = arith.constant 18 : index
    %32 = vector.load %arg3[%c1_41, %c18_42] : memref<3x640xf32, #tpu.memory_space<vmem>>, vector<1x512xf32>
    %c14 = arith.constant 14 : index
    %c0_43 = arith.constant 0 : index
    %33 = vector.load %arg4[%c14, %c0_43] : memref<32x512xf32, #tpu.memory_space<vmem>>, vector<1x512xf32>
    tpu.vector_store %arg4[%c14, %c0_43], %32 {strides = array<i32>} : memref<32x512xf32, #tpu.memory_space<vmem>>, vector<1x512xf32>,
    %c1_44 = arith.constant 1 : index
    %c32_45 = arith.constant 32 : index
    %34 = vector.load %arg3[%c1_44, %c32_45] : memref<3x640xf32, #tpu.memory_space<vmem>>, vector<1x512xf32>
    %c15 = arith.constant 15 : index
    %c0_46 = arith.constant 0 : index
    %35 = vector.load %arg4[%c15, %c0_46] : memref<32x512xf32, #tpu.memory_space<vmem>>, vector<1x512xf32>
    tpu.vector_store %arg4[%c15, %c0_46], %34 {strides = array<i32>} : memref<32x512xf32, #tpu.memory_space<vmem>>, vector<1x512xf32>,
    %c1_47 = arith.constant 1 : index
    %c33_48 = arith.constant 33 : index
    %36 = vector.load %arg3[%c1_47, %c33_48] : memref<3x640xf32, #tpu.memory_space<vmem>>, vector<1x512xf32>
    %c16_49 = arith.constant 16 : index
    %c0_50 = arith.constant 0 : index
    %37 = vector.load %arg4[%c16_49, %c0_50] : memref<32x512xf32, #tpu.memory_space<vmem>>, vector<1x512xf32>
    tpu.vector_store %arg4[%c16_49, %c0_50], %36 {strides = array<i32>} : memref<32x512xf32, #tpu.memory_space<vmem>>, vector<1x512xf32>,
    %c1_51 = arith.constant 1 : index
    %c34_52 = arith.constant 34 : index
    %38 = vector.load %arg3[%c1_51, %c34_52] : memref<3x640xf32, #tpu.memory_space<vmem>>, vector<1x512xf32>
    %c17_53 = arith.constant 17 : index
    %c0_54 = arith.constant 0 : index
    %39 = vector.load %arg4[%c17_53, %c0_54] : memref<32x512xf32, #tpu.memory_space<vmem>>, vector<1x512xf32>
    tpu.vector_store %arg4[%c17_53, %c0_54], %38 {strides = array<i32>} : memref<32x512xf32, #tpu.memory_space<vmem>>, vector<1x512xf32>,
    %c2_55 = arith.constant 2 : index
    %c0_56 = arith.constant 0 : index
    %40 = vector.load %arg3[%c2_55, %c0_56] : memref<3x640xf32, #tpu.memory_space<vmem>>, vector<1x512xf32>
    %c18_57 = arith.constant 18 : index
    %c0_58 = arith.constant 0 : index
    %41 = vector.load %arg4[%c18_57, %c0_58] : memref<32x512xf32, #tpu.memory_space<vmem>>, vector<1x512xf32>
    tpu.vector_store %arg4[%c18_57, %c0_58], %40 {strides = array<i32>} : memref<32x512xf32, #tpu.memory_space<vmem>>, vector<1x512xf32>,
    %c2_59 = arith.constant 2 : index
    %c1_60 = arith.constant 1 : index
    %42 = vector.load %arg3[%c2_59, %c1_60] : memref<3x640xf32, #tpu.memory_space<vmem>>, vector<1x512xf32>
    %c19 = arith.constant 19 : index
    %c0_61 = arith.constant 0 : index
    %43 = vector.load %arg4[%c19, %c0_61] : memref<32x512xf32, #tpu.memory_space<vmem>>, vector<1x512xf32>
    tpu.vector_store %arg4[%c19, %c0_61], %42 {strides = array<i32>} : memref<32x512xf32, #tpu.memory_space<vmem>>, vector<1x512xf32>,
    %c2_62 = arith.constant 2 : index
    %c2_63 = arith.constant 2 : index
    %44 = vector.load %arg3[%c2_62, %c2_63] : memref<3x640xf32, #tpu.memory_space<vmem>>, vector<1x512xf32>
    %c20 = arith.constant 20 : index
    %c0_64 = arith.constant 0 : index
    %45 = vector.load %arg4[%c20, %c0_64] : memref<32x512xf32, #tpu.memory_space<vmem>>, vector<1x512xf32>
    tpu.vector_store %arg4[%c20, %c0_64], %44 {strides = array<i32>} : memref<32x512xf32, #tpu.memory_space<vmem>>, vector<1x512xf32>,
    %c2_65 = arith.constant 2 : index
    %c16_66 = arith.constant 16 : index
    %46 = vector.load %arg3[%c2_65, %c16_66] : memref<3x640xf32, #tpu.memory_space<vmem>>, vector<1x512xf32>
    %c21 = arith.constant 21 : index
    %c0_67 = arith.constant 0 : index
    %47 = vector.load %arg4[%c21, %c0_67] : memref<32x512xf32, #tpu.memory_space<vmem>>, vector<1x512xf32>
    tpu.vector_store %arg4[%c21, %c0_67], %46 {strides = array<i32>} : memref<32x512xf32, #tpu.memory_space<vmem>>, vector<1x512xf32>,
    %c2_68 = arith.constant 2 : index
    %c17_69 = arith.constant 17 : index
    %48 = vector.load %arg3[%c2_68, %c17_69] : memref<3x640xf32, #tpu.memory_space<vmem>>, vector<1x512xf32>
    %c22 = arith.constant 22 : index
    %c0_70 = arith.constant 0 : index
    %49 = vector.load %arg4[%c22, %c0_70] : memref<32x512xf32, #tpu.memory_space<vmem>>, vector<1x512xf32>
    tpu.vector_store %arg4[%c22, %c0_70], %48 {strides = array<i32>} : memref<32x512xf32, #tpu.memory_space<vmem>>, vector<1x512xf32>,
    %c2_71 = arith.constant 2 : index
    %c18_72 = arith.constant 18 : index
    %50 = vector.load %arg3[%c2_71, %c18_72] : memref<3x640xf32, #tpu.memory_space<vmem>>, vector<1x512xf32>
    %c23 = arith.constant 23 : index
    %c0_73 = arith.constant 0 : index
    %51 = vector.load %arg4[%c23, %c0_73] : memref<32x512xf32, #tpu.memory_space<vmem>>, vector<1x512xf32>
    tpu.vector_store %arg4[%c23, %c0_73], %50 {strides = array<i32>} : memref<32x512xf32, #tpu.memory_space<vmem>>, vector<1x512xf32>,
    %c2_74 = arith.constant 2 : index
    %c32_75 = arith.constant 32 : index
    %52 = vector.load %arg3[%c2_74, %c32_75] : memref<3x640xf32, #tpu.memory_space<vmem>>, vector<1x512xf32>
    %c24 = arith.constant 24 : index
    %c0_76 = arith.constant 0 : index
    %53 = vector.load %arg4[%c24, %c0_76] : memref<32x512xf32, #tpu.memory_space<vmem>>, vector<1x512xf32>
    tpu.vector_store %arg4[%c24, %c0_76], %52 {strides = array<i32>} : memref<32x512xf32, #tpu.memory_space<vmem>>, vector<1x512xf32>,
    %c2_77 = arith.constant 2 : index
    %c33_78 = arith.constant 33 : index
    %54 = vector.load %arg3[%c2_77, %c33_78] : memref<3x640xf32, #tpu.memory_space<vmem>>, vector<1x512xf32>
    %c25 = arith.constant 25 : index
    %c0_79 = arith.constant 0 : index
    %55 = vector.load %arg4[%c25, %c0_79] : memref<32x512xf32, #tpu.memory_space<vmem>>, vector<1x512xf32>
    tpu.vector_store %arg4[%c25, %c0_79], %54 {strides = array<i32>} : memref<32x512xf32, #tpu.memory_space<vmem>>, vector<1x512xf32>,
    %c2_80 = arith.constant 2 : index
    %c34_81 = arith.constant 34 : index
    %56 = vector.load %arg3[%c2_80, %c34_81] : memref<3x640xf32, #tpu.memory_space<vmem>>, vector<1x512xf32>
    %c26 = arith.constant 26 : index
    %c0_82 = arith.constant 0 : index
    %57 = vector.load %arg4[%c26, %c0_82] : memref<32x512xf32, #tpu.memory_space<vmem>>, vector<1x512xf32>
    tpu.vector_store %arg4[%c26, %c0_82], %56 {strides = array<i32>} : memref<32x512xf32, #tpu.memory_space<vmem>>, vector<1x512xf32>,
    %cst_83 = arith.constant 1.000000e+00 : f32
    %58 = vector.broadcast %cst_83 : f32 to vector<1x512xf32>
    %c27 = arith.constant 27 : index
    %c0_84 = arith.constant 0 : index
    %59 = vector.load %arg4[%c27, %c0_84] : memref<32x512xf32, #tpu.memory_space<vmem>>, vector<1x512xf32>
    tpu.vector_store %arg4[%c27, %c0_84], %58 {strides = array<i32>} : memref<32x512xf32, #tpu.memory_space<vmem>>, vector<1x512xf32>,
    %cst_85 = arith.constant 0.000000e+00 : f32
    %60 = vector.broadcast %cst_85 : f32 to vector<4x512xf32>
    %c28 = arith.constant 28 : index
    %c0_86 = arith.constant 0 : index
    %61 = vector.load %arg4[%c28, %c0_86] : memref<32x512xf32, #tpu.memory_space<vmem>>, vector<4x512xf32>
    tpu.vector_store %arg4[%c28, %c0_86], %60 {strides = array<i32>} : memref<32x512xf32, #tpu.memory_space<vmem>>, vector<4x512xf32>,
    %c0_87 = arith.constant 0 : index
    %c0_88 = arith.constant 0 : index
    %62 = vector.load %arg0[%c0_87, %c0_88] : memref<8x32xf32, #tpu.memory_space<vmem>>, vector<8x32xf32>
    %c0_89 = arith.constant 0 : index
    %c0_90 = arith.constant 0 : index
    %63 = vector.load %arg4[%c0_89, %c0_90] : memref<32x512xf32, #tpu.memory_space<vmem>>, vector<32x512xf32>
    %cst_91 = arith.constant dense<0.000000e+00> : vector<8x512xf32>
    %64 = tpu.matmul %62, %63, %cst_91 {dimension_numbers = #tpu.dot_dimension_numbers<[1], [0], [0], [1], [0, 0, 1, 1], [], []>} : vector<8x32xf32>, vector<32x512xf32>, vector<8x512xf32> -> vector<8x512xf32>
    %c0_92 = arith.constant 0 : index
    %c0_93 = arith.constant 0 : index
    %65 = vector.load %arg2[%c0_92, %c0_93] : memref<8x512xf32, #tpu.memory_space<vmem>>, vector<8x512xf32>
    tpu.vector_store %arg2[%c0_92, %c0_93], %64 {strides = array<i32>} : memref<8x512xf32, #tpu.memory_space<vmem>>, vector<8x512xf32>,
    return
  }
}

</mosaic_0001>

<llo_original>
// kernel: conv2d_pallas.1
$region0: #{conv2d_pallas.1}
  #allocation0 [shape = 'u32[]', space=smem, size = 0x4, offset = 0x4, fixed_abs, tag = 'smem constant byte address 0x4 - core index']
  #allocation1 [shape = 'u32[144,128]{1,0:T(1,128)}', space=vmem, size = 0x12000, scoped, tag = 'internal scratch']
  #allocation2 [shape = 'f32[3,640]{1,0:T(4,128)}', space=vmem, size = 0x2800, scoped, tag = 'scratch operand']
  #allocation3 [shape = 'f32[32,512]{1,0:T(8,128)}', space=vmem, size = 0x10000, scoped, tag = 'scratch operand']
  %s0 = inlined_call_operand.vmem [shape: f32[8,32], index: 0, kind: input, shape index: {}]
  %s1 = inlined_call_operand.vmem [shape: f32[3,512], index: 1, kind: input, shape index: {}]
  %s2 = inlined_call_operand.vmem [shape: f32[8,512], index: 2, kind: output, shape index: {}]
  %s3 = sld [smem:[#allocation0]]
  $region18: #{conv2d_pallas.1} parent=0
    _
  %s5 = ssub.s32 1, %s3
  %s6 = scalar_select 0, %s5, %s3
  // Predicated region
  $region2: #{conv2d_pallas.1} parent=0 // pred_check
    _
  $region3: #{conv2d_pallas.1} parent=0 // pred_check_branch
    %8 = sbr.rel (0) target = $region5
  $region4: #{conv2d_pallas.1} parent=0 // pred_region
    _
  $region5: #{conv2d_pallas.1} parent=0 // pred_fallthru
    _
  // Predicated region
  $region6: #{conv2d_pallas.1} parent=0 // pred_check
    _
  $region7: #{conv2d_pallas.1} parent=0 // pred_check_branch
    %10 = sbr.rel (0) target = $region9
  $region8: #{conv2d_pallas.1} parent=0 // pred_region
    _
  $region9: #{conv2d_pallas.1} parent=0 // pred_fallthru
    _
  %v11 = vld [vmem:[%s1] sm:$0x77]
  %v12 = vld [vmem:[%s1 + $0x8] sm:$0x77]
  %13 = vst [vmem:[#allocation2] sm:$0x77] %v11
  %14 = vst [vmem:[#allocation2 + $0x8] sm:$0x77] %v12
  %15 = vst [vmem:[#allocation2 + $0x10] sm:$0x7] 0.0
  %v16 = vld [vmem:[#allocation2] ss:$4 sm:$0xf]
  %v17 = vlaneseq
  %vm18 = vcmp.ge.s32.totalorder %v17, 0
  %vm19 = vcmp.lt.s32.totalorder %v17, 512
  %vm20 = vmand %vm18, %vm19
  %21 = vst.msk [vmem:[#allocation3] ss:$8 sm:$0xf] %vm20, %v16
  %22 = vst.msk [vmem:[#allocation3] ss:$8 sm:$0x0] %vm20, %v16
  %v23 = vld [vmem:[#allocation2] ss:$4 sm:$0x1f]
  %25 = vrot.lane.b32.xlu0 %v23, 127
  %v26 = vpop.permute.xlu0 %25
  %v27 = vrot.slane %v26, 1
  %vm28 = vcmask 1039360
  %v29 = vsel %vm28, %v26, %v27
  %s31 = scalar_lea.vmem [#allocation3], 1
  %32 = vst.msk [vmem:[%s31] ss:$8 sm:$0xf] %vm20, %v29
  %33 = vst.msk [vmem:[%s31] ss:$8 sm:$0x0] %vm20, %v29
  %v34 = vld [vmem:[#allocation2] ss:$4 sm:$0x1f]
  %36 = vrot.lane.b32.xlu0 %v34, 126
  %v37 = vpop.permute.xlu0 %36
  %v38 = vrot.slane %v37, 1
  %vm39 = vcmask 1031168
  %v40 = vsel %vm39, %v37, %v38
  %s42 = scalar_lea.vmem [#allocation3], 2
  %43 = vst.msk [vmem:[%s42] ss:$8 sm:$0xf] %vm20, %v40
  %44 = vst.msk [vmem:[%s42] ss:$8 sm:$0x0] %vm20, %v40
  %v45 = vld [vmem:[#allocation2] ss:$4 sm:$0x1f]
  %47 = vrot.lane.b32.xlu0 %v45, 112
  %v48 = vpop.permute.xlu0 %47
  %v49 = vrot.slane %v48, 1
  %vm50 = vcmask 916480
  %v51 = vsel %vm50, %v48, %v49
  %s53 = scalar_lea.vmem [#allocation3], 3
  %54 = vst.msk [vmem:[%s53] ss:$8 sm:$0xf] %vm20, %v51
  %55 = vst.msk [vmem:[%s53] ss:$8 sm:$0x0] %vm20, %v51
  %v56 = vld [vmem:[#allocation2] ss:$4 sm:$0x1f]
  %58 = vrot.lane.b32.xlu0 %v56, 111
  %v59 = vpop.permute.xlu0 %58
  %v60 = vrot.slane %v59, 1
  %vm61 = vcmask 908288
  %v62 = vsel %vm61, %v59, %v60
  %s64 = scalar_lea.vmem [#allocation3], 4
  %65 = vst.msk [vmem:[%s64] ss:$8 sm:$0xf] %vm20, %v62
  %66 = vst.msk [vmem:[%s64] ss:$8 sm:$0x0] %vm20, %v62
  %v67 = vld [vmem:[#allocation2] ss:$4 sm:$0x1f]
  %69 = vrot.lane.b32.xlu0 %v67, 110
  %v70 = vpop.permute.xlu0 %69
  %v71 = vrot.slane %v70, 1
  %vm72 = vcmask 900096
  %v73 = vsel %vm72, %v70, %v71
  %s75 = scalar_lea.vmem [#allocation3], 5
  %76 = vst.msk [vmem:[%s75] ss:$8 sm:$0xf] %vm20, %v73
  %77 = vst.msk [vmem:[%s75] ss:$8 sm:$0x0] %vm20, %v73
  %v78 = vld [vmem:[#allocation2] ss:$4 sm:$0x1f]
  %80 = vrot.lane.b32.xlu0 %v78, 96
  %v81 = vpop.permute.xlu0 %80
  %v82 = vrot.slane %v81, 1
  %vm83 = vcmask 785408
  %v84 = vsel %vm83, %v81, %v82
  %s86 = scalar_lea.vmem [#allocation3], 6
  %87 = vst.msk [vmem:[%s86] ss:$8 sm:$0xf] %vm20, %v84
  %88 = vst.msk [vmem:[%s86] ss:$8 sm:$0x0] %vm20, %v84
  %v89 = vld [vmem:[#allocation2] ss:$4 sm:$0x1f]
  %91 = vrot.lane.b32.xlu0 %v89, 95
  %v92 = vpop.permute.xlu0 %91
  %v93 = vrot.slane %v92, 1
  %vm94 = vcmask 777216
  %v95 = vsel %vm94, %v92, %v93
  %s97 = scalar_lea.vmem [#allocation3], 7
  %98 = vst.msk [vmem:[%s97] ss:$8 sm:$0xf] %vm20, %v95
  %99 = vst.msk [vmem:[%s97] ss:$8 sm:$0x0] %vm20, %v95
  %v100 = vld [vmem:[#allocation2] ss:$4 sm:$0x1f]
  %102 = vrot.lane.b32.xlu0 %v100, 94
  %v103 = vpop.permute.xlu0 %102
  %v104 = vrot.slane %v103, 1
  %vm105 = vcmask 769024
  %v106 = vsel %vm105, %v103, %v104
  %s108 = scalar_lea.vmem [#allocation3], 32
  %109 = vst.msk [vmem:[%s108] ss:$8 sm:$0xf] %vm20, %v106
  %110 = vst.msk [vmem:[%s108] ss:$8 sm:$0x0] %vm20, %v106
  %s111 = scalar_lea.vmem [#allocation2], 1
  %v112 = vld [vmem:[%s111] ss:$4 sm:$0xf]
  %s113 = scalar_lea.vmem [#allocation3], 33
  %114 = vst.msk [vmem:[%s113] ss:$8 sm:$0xf] %vm20, %v112
  %115 = vst.msk [vmem:[%s113] ss:$8 sm:$0x0] %vm20, %v112
  %v116 = vld [vmem:[%s111] ss:$4 sm:$0x1f]
  %118 = vrot.lane.b32.xlu0 %v116, 127
  %v119 = vpop.permute.xlu0 %118
  %v120 = vrot.slane %v119, 1
  %v121 = vsel %vm28, %v119, %v120
  %s123 = scalar_lea.vmem [#allocation3], 34
  %124 = vst.msk [vmem:[%s123] ss:$8 sm:$0xf] %vm20, %v121
  %125 = vst.msk [vmem:[%s123] ss:$8 sm:$0x0] %vm20, %v121
  %v126 = vld [vmem:[%s111] ss:$4 sm:$0x1f]
  %128 = vrot.lane.b32.xlu0 %v126, 126
  %v129 = vpop.permute.xlu0 %128
  %v130 = vrot.slane %v129, 1
  %v131 = vsel %vm39, %v129, %v130
  %s133 = scalar_lea.vmem [#allocation3], 35
  %134 = vst.msk [vmem:[%s133] ss:$8 sm:$0xf] %vm20, %v131
  %135 = vst.msk [vmem:[%s133] ss:$8 sm:$0x0] %vm20, %v131
  %v136 = vld [vmem:[%s111] ss:$4 sm:$0x1f]
  %138 = vrot.lane.b32.xlu0 %v136, 112
  %v139 = vpop.permute.xlu0 %138
  %v140 = vrot.slane %v139, 1
  %v141 = vsel %vm50, %v139, %v140
  %s143 = scalar_lea.vmem [#allocation3], 36
  %144 = vst.msk [vmem:[%s143] ss:$8 sm:$0xf] %vm20, %v141
  %145 = vst.msk [vmem:[%s143] ss:$8 sm:$0x0] %vm20, %v141
  %v146 = vld [vmem:[%s111] ss:$4 sm:$0x1f]
  %148 = vrot.lane.b32.xlu0 %v146, 111
  %v149 = vpop.permute.xlu0 %148
  %v150 = vrot.slane %v149, 1
  %v151 = vsel %vm61, %v149, %v150
  %s153 = scalar_lea.vmem [#allocation3], 37
  %154 = vst.msk [vmem:[%s153] ss:$8 sm:$0xf] %vm20, %v151
  %155 = vst.msk [vmem:[%s153] ss:$8 sm:$0x0] %vm20, %v151
  %v156 = vld [vmem:[%s111] ss:$4 sm:$0x1f]
  %158 = vrot.lane.b32.xlu0 %v156, 110
  %v159 = vpop.permute.xlu0 %158
  %v160 = vrot.slane %v159, 1
  %v161 = vsel %vm72, %v159, %v160
  %s163 = scalar_lea.vmem [#allocation3], 38
  %164 = vst.msk [vmem:[%s163] ss:$8 sm:$0xf] %vm20, %v161
  %165 = vst.msk [vmem:[%s163] ss:$8 sm:$0x0] %vm20, %v161
  %v166 = vld [vmem:[%s111] ss:$4 sm:$0x1f]
  %168 = vrot.lane.b32.xlu0 %v166, 96
  %v169 = vpop.permute.xlu0 %168
  %v170 = vrot.slane %v169, 1
  %v171 = vsel %vm83, %v169, %v170
  %s173 = scalar_lea.vmem [#allocation3], 39
  %174 = vst.msk [vmem:[%s173] ss:$8 sm:$0xf] %vm20, %v171
  %175 = vst.msk [vmem:[%s173] ss:$8 sm:$0x0] %vm20, %v171
  %v176 = vld [vmem:[%s111] ss:$4 sm:$0x1f]
  %178 = vrot.lane.b32.xlu0 %v176, 95
  %v179 = vpop.permute.xlu0 %178
  %v180 = vrot.slane %v179, 1
  %v181 = vsel %vm94, %v179, %v180
  %s183 = scalar_lea.vmem [#allocation3], 64
  %184 = vst.msk [vmem:[%s183] ss:$8 sm:$0xf] %vm20, %v181
  %185 = vst.msk [vmem:[%s183] ss:$8 sm:$0x0] %vm20, %v181
  %v186 = vld [vmem:[%s111] ss:$4 sm:$0x1f]
  %188 = vrot.lane.b32.xlu0 %v186, 94
  %v189 = vpop.permute.xlu0 %188
  %v190 = vrot.slane %v189, 1
  %v191 = vsel %vm105, %v189, %v190
  %s193 = scalar_lea.vmem [#allocation3], 65
  %194 = vst.msk [vmem:[%s193] ss:$8 sm:$0xf] %vm20, %v191
  %195 = vst.msk [vmem:[%s193] ss:$8 sm:$0x0] %vm20, %v191
  %s196 = scalar_lea.vmem [#allocation2], 2
  %v197 = vld [vmem:[%s196] ss:$4 sm:$0xf]
  %s198 = scalar_lea.vmem [#allocation3], 66
  %199 = vst.msk [vmem:[%s198] ss:$8 sm:$0xf] %vm20, %v197
  %200 = vst.msk [vmem:[%s198] ss:$8 sm:$0x0] %vm20, %v197
  %v201 = vld [vmem:[%s196] ss:$4 sm:$0x1f]
  %203 = vrot.lane.b32.xlu0 %v201, 127
  %v204 = vpop.permute.xlu0 %203
  %v205 = vrot.slane %v204, 1
  %v206 = vsel %vm28, %v204, %v205
  %s208 = scalar_lea.vmem [#allocation3], 67
  %209 = vst.msk [vmem:[%s208] ss:$8 sm:$0xf] %vm20, %v206
  %210 = vst.msk [vmem:[%s208] ss:$8 sm:$0x0] %vm20, %v206
  %v211 = vld [vmem:[%s196] ss:$4 sm:$0x1f]
  %213 = vrot.lane.b32.xlu0 %v211, 126
  %v214 = vpop.permute.xlu0 %213
  %v215 = vrot.slane %v214, 1
  %v216 = vsel %vm39, %v214, %v215
  %s218 = scalar_lea.vmem [#allocation3], 68
  %219 = vst.msk [vmem:[%s218] ss:$8 sm:$0xf] %vm20, %v216
  %220 = vst.msk [vmem:[%s218] ss:$8 sm:$0x0] %vm20, %v216
  %v221 = vld [vmem:[%s196] ss:$4 sm:$0x1f]
  %223 = vrot.lane.b32.xlu0 %v221, 112
  %v224 = vpop.permute.xlu0 %223
  %v225 = vrot.slane %v224, 1
  %v226 = vsel %vm50, %v224, %v225
  %s228 = scalar_lea.vmem [#allocation3], 69
  %229 = vst.msk [vmem:[%s228] ss:$8 sm:$0xf] %vm20, %v226
  %230 = vst.msk [vmem:[%s228] ss:$8 sm:$0x0] %vm20, %v226
  %v231 = vld [vmem:[%s196] ss:$4 sm:$0x1f]
  %233 = vrot.lane.b32.xlu0 %v231, 111
  %v234 = vpop.permute.xlu0 %233
  %v235 = vrot.slane %v234, 1
  %v236 = vsel %vm61, %v234, %v235
  %s238 = scalar_lea.vmem [#allocation3], 70
  %239 = vst.msk [vmem:[%s238] ss:$8 sm:$0xf] %vm20, %v236
  %240 = vst.msk [vmem:[%s238] ss:$8 sm:$0x0] %vm20, %v236
  %v241 = vld [vmem:[%s196] ss:$4 sm:$0x1f]
  %243 = vrot.lane.b32.xlu0 %v241, 110
  %v244 = vpop.permute.xlu0 %243
  %v245 = vrot.slane %v244, 1
  %v246 = vsel %vm72, %v244, %v245
  %s248 = scalar_lea.vmem [#allocation3], 71
  %249 = vst.msk [vmem:[%s248] ss:$8 sm:$0xf] %vm20, %v246
  %250 = vst.msk [vmem:[%s248] ss:$8 sm:$0x0] %vm20, %v246
  %v251 = vld [vmem:[%s196] ss:$4 sm:$0x1f]
  %253 = vrot.lane.b32.xlu0 %v251, 96
  %v254 = vpop.permute.xlu0 %253
  %v255 = vrot.slane %v254, 1
  %v256 = vsel %vm83, %v254, %v255
  %s258 = scalar_lea.vmem [#allocation3], 96
  %259 = vst.msk [vmem:[%s258] ss:$8 sm:$0xf] %vm20, %v256
  %260 = vst.msk [vmem:[%s258] ss:$8 sm:$0x0] %vm20, %v256
  %v261 = vld [vmem:[%s196] ss:$4 sm:$0x1f]
  %263 = vrot.lane.b32.xlu0 %v261, 95
  %v264 = vpop.permute.xlu0 %263
  %v265 = vrot.slane %v264, 1
  %v266 = vsel %vm94, %v264, %v265
  %s268 = scalar_lea.vmem [#allocation3], 97
  %269 = vst.msk [vmem:[%s268] ss:$8 sm:$0xf] %vm20, %v266
  %270 = vst.msk [vmem:[%s268] ss:$8 sm:$0x0] %vm20, %v266
  %v271 = vld [vmem:[%s196] ss:$4 sm:$0x1f]
  %273 = vrot.lane.b32.xlu0 %v271, 94
  %v274 = vpop.permute.xlu0 %273
  %v275 = vrot.slane %v274, 1
  %v276 = vsel %vm105, %v274, %v275
  %s278 = scalar_lea.vmem [#allocation3], 98
  %279 = vst.msk [vmem:[%s278] ss:$8 sm:$0xf] %vm20, %v276
  %280 = vst.msk [vmem:[%s278] ss:$8 sm:$0x0] %vm20, %v276
  %s281 = scalar_lea.vmem [#allocation3], 99
  %282 = vst.msk [vmem:[%s281] ss:$8 sm:$0xf] %vm20, 1.0
  %283 = vst.msk [vmem:[%s281] ss:$8 sm:$0x0] %vm20, 1.0
  %284 = vst [vmem:[#allocation3 + $0x60] sm:$0xf0] 0.0
  %285 = vst [vmem:[#allocation3 + $0x68] sm:$0xf0] 0.0
  %286 = vst [vmem:[#allocation3 + $0x70] sm:$0xf0] 0.0
  %287 = vst [vmem:[#allocation3 + $0x78] sm:$0xf0] 0.0
  %v288 = vld [vmem:[%s0] sm:$0xff]
  %v289 = vld [vmem:[#allocation3] sm:$0xff]
  %v290 = vld [vmem:[#allocation3 + $0x8] sm:$0xff]
  %v291 = vld [vmem:[#allocation3 + $0x10] sm:$0xff]
  %v292 = vld [vmem:[#allocation3 + $0x18] sm:$0xff]
  %v293 = vld [vmem:[#allocation3 + $0x20] sm:$0xff]
  %v294 = vld [vmem:[#allocation3 + $0x28] sm:$0xff]
  %v295 = vld [vmem:[#allocation3 + $0x30] sm:$0xff]
  %v296 = vld [vmem:[#allocation3 + $0x38] sm:$0xff]
  %v297 = vld [vmem:[#allocation3 + $0x40] sm:$0xff]
  %v298 = vld [vmem:[#allocation3 + $0x48] sm:$0xff]
  %v299 = vld [vmem:[#allocation3 + $0x50] sm:$0xff]
  %v300 = vld [vmem:[#allocation3 + $0x58] sm:$0xff]
  %v301 = vld [vmem:[#allocation3 + $0x60] sm:$0xff]
  %v302 = vld [vmem:[#allocation3 + $0x68] sm:$0xff]
  %v303 = vld [vmem:[#allocation3 + $0x70] sm:$0xff]
  %v304 = vld [vmem:[#allocation3 + $0x78] sm:$0xff]
  %vm305 = vcmask 261120
  %v307 = vsel %vm305, %v288, 0
  %309 = vmatprep.subr.mxu0 0.0
  %310 = vmatpush1.msra.mxu0 0.0
  %311 = vmatprep.subr.mxu0 0.0
  %312 = vmatpush1.msra.mxu0 0.0
  %313 = vmatprep.subr.mxu0 0.0
  %314 = vmatpush1.msra.mxu0 0.0
  %315 = vmatprep.subr.mxu0 0.0
  %316 = vmatpush1.msra.mxu0 0.0
  %317 = vmatprep.subr.mxu0 0.0
  %318 = vmatpush1.msra.mxu0 0.0
  %319 = vmatprep.subr.mxu0 0.0
  %320 = vmatpush1.msra.mxu0 0.0
  %321 = vmatprep.subr.mxu0 0.0
  %322 = vmatpush1.msra.mxu0 0.0
  %323 = vmatprep.subr.mxu0 0.0
  %324 = vmatpush1.msra.mxu0 0.0
  %325 = vmatprep.subr.mxu0 0.0
  %326 = vmatpush1.msra.mxu0 0.0
  %327 = vmatprep.subr.mxu0 0.0
  %328 = vmatpush1.msra.mxu0 0.0
  %329 = vmatprep.subr.mxu0 0.0
  %330 = vmatpush1.msra.mxu0 0.0
  %331 = vmatprep.subr.mxu0 0.0
  %332 = vmatpush1.msra.mxu0 0.0
  %333 = vmatprep.subr.mxu0 %v302
  %334 = vmatpush1.msra.mxu0 %v301
  %335 = vmatprep.subr.mxu0 %v298
  %336 = vmatpush1.msra.mxu0 %v297
  %337 = vmatprep.subr.mxu0 %v294
  %338 = vmatpush1.msra.mxu0 %v293
  %339 = vmatprep.subr.mxu0 %v290
  %340 = vmatpush1.msra.mxu0 %v289
  %341 = vmatprep.subr.mxu0 0.0
  %342 = vmatpush2.msra.mxu0 0.0
  %343 = vmatprep.subr.mxu0 0.0
  %344 = vmatpush2.msra.mxu0 0.0
  %345 = vmatprep.subr.mxu0 0.0
  %346 = vmatpush2.msra.mxu0 0.0
  %347 = vmatprep.subr.mxu0 0.0
  %348 = vmatpush2.msra.mxu0 0.0
  %349 = vmatprep.subr.mxu0 0.0
  %350 = vmatpush2.msra.mxu0 0.0
  %351 = vmatprep.subr.mxu0 0.0
  %352 = vmatpush2.msra.mxu0 0.0
  %353 = vmatprep.subr.mxu0 0.0
  %354 = vmatpush2.msra.mxu0 0.0
  %355 = vmatprep.subr.mxu0 0.0
  %356 = vmatpush2.msra.mxu0 0.0
  %357 = vmatprep.subr.mxu0 0.0
  %358 = vmatpush2.msra.mxu0 0.0
  %359 = vmatprep.subr.mxu0 0.0
  %360 = vmatpush2.msra.mxu0 0.0
  %361 = vmatprep.subr.mxu0 0.0
  %362 = vmatpush2.msra.mxu0 0.0
  %363 = vmatprep.subr.mxu0 0.0
  %364 = vmatpush2.msra.mxu0 0.0
  %365 = vmatprep.subr.mxu0 0.0
  %366 = vmatpush2.msra.mxu0 0.0
  %367 = vmatprep.subr.mxu0 0.0
  %368 = vmatpush2.msra.mxu0 0.0
  %369 = vmatprep.subr.mxu0 0.0
  %370 = vmatpush2.msra.mxu0 0.0
  %371 = vmatprep.subr.mxu0 0.0
  %372 = vmatpush2.msra.mxu0 0.0
  %373 = vmatprep.mubr.f32.mxu0 0.0
  %374 = vmatmul.mubr.f32.gmra.mxu0 %v307
  %v375 = vpop.f32.mrf.mxu0
  %v376 = vadd.f32 0.0, %v375
  %v377 = vpop.f32.mrf.mxu0
  %v378 = vadd.f32 0.0, %v377
  %379 = vdwg.mxu0
  %380 = vmatprep.subr.mxu0 0.0
  %381 = vmatpush1.msra.mxu0 0.0
  %382 = vmatprep.subr.mxu0 0.0
  %383 = vmatpush1.msra.mxu0 0.0
  %384 = vmatprep.subr.mxu0 0.0
  %385 = vmatpush1.msra.mxu0 0.0
  %386 = vmatprep.subr.mxu0 0.0
  %387 = vmatpush1.msra.mxu0 0.0
  %388 = vmatprep.subr.mxu0 0.0
  %389 = vmatpush1.msra.mxu0 0.0
  %390 = vmatprep.subr.mxu0 0.0
  %391 = vmatpush1.msra.mxu0 0.0
  %392 = vmatprep.subr.mxu0 0.0
  %393 = vmatpush1.msra.mxu0 0.0
  %394 = vmatprep.subr.mxu0 0.0
  %395 = vmatpush1.msra.mxu0 0.0
  %396 = vmatprep.subr.mxu0 0.0
  %397 = vmatpush1.msra.mxu0 0.0
  %398 = vmatprep.subr.mxu0 0.0
  %399 = vmatpush1.msra.mxu0 0.0
  %400 = vmatprep.subr.mxu0 0.0
  %401 = vmatpush1.msra.mxu0 0.0
  %402 = vmatprep.subr.mxu0 0.0
  %403 = vmatpush1.msra.mxu0 0.0
  %404 = vmatprep.subr.mxu0 %v304
  %405 = vmatpush1.msra.mxu0 %v303
  %406 = vmatprep.subr.mxu0 %v300
  %407 = vmatpush1.msra.mxu0 %v299
  %408 = vmatprep.subr.mxu0 %v296
  %409 = vmatpush1.msra.mxu0 %v295
  %410 = vmatprep.subr.mxu0 %v292
  %411 = vmatpush1.msra.mxu0 %v291
  %412 = vmatprep.subr.mxu0 0.0
  %413 = vmatpush2.msra.mxu0 0.0
  %414 = vmatprep.subr.mxu0 0.0
  %415 = vmatpush2.msra.mxu0 0.0
  %416 = vmatprep.subr.mxu0 0.0
  %417 = vmatpush2.msra.mxu0 0.0
  %418 = vmatprep.subr.mxu0 0.0
  %419 = vmatpush2.msra.mxu0 0.0
  %420 = vmatprep.subr.mxu0 0.0
  %421 = vmatpush2.msra.mxu0 0.0
  %422 = vmatprep.subr.mxu0 0.0
  %423 = vmatpush2.msra.mxu0 0.0
  %424 = vmatprep.subr.mxu0 0.0
  %425 = vmatpush2.msra.mxu0 0.0
  %426 = vmatprep.subr.mxu0 0.0
  %427 = vmatpush2.msra.mxu0 0.0
  %428 = vmatprep.subr.mxu0 0.0
  %429 = vmatpush2.msra.mxu0 0.0
  %430 = vmatprep.subr.mxu0 0.0
  %431 = vmatpush2.msra.mxu0 0.0
  %432 = vmatprep.subr.mxu0 0.0
  %433 = vmatpush2.msra.mxu0 0.0
  %434 = vmatprep.subr.mxu0 0.0
  %435 = vmatpush2.msra.mxu0 0.0
  %436 = vmatprep.subr.mxu0 0.0
  %437 = vmatpush2.msra.mxu0 0.0
  %438 = vmatprep.subr.mxu0 0.0
  %439 = vmatpush2.msra.mxu0 0.0
  %440 = vmatprep.subr.mxu0 0.0
  %441 = vmatpush2.msra.mxu0 0.0
  %442 = vmatprep.subr.mxu0 0.0
  %443 = vmatpush2.msra.mxu0 0.0
  %444 = vmatprep.mubr.f32.mxu0 0.0
  %445 = vmatmul.mubr.f32.gmra.mxu0 %v307
  %v446 = vpop.f32.mrf.mxu0
  %v447 = vadd.f32 0.0, %v446
  %v448 = vpop.f32.mrf.mxu0
  %v449 = vadd.f32 0.0, %v448
  %450 = vdwg.mxu0
  %451 = vst [vmem:[%s2] sm:$0xff] %v376
  %452 = vst [vmem:[%s2 + $0x8] sm:$0xff] %v378
  %453 = vst [vmem:[%s2 + $0x10] sm:$0xff] %v447
  %454 = vst [vmem:[%s2 + $0x18] sm:$0xff] %v449
  // Predicated region
  $region10: #{conv2d_pallas.1} parent=0 // pred_check
    _
  $region11: #{conv2d_pallas.1} parent=0 // pred_check_branch
    %456 = sbr.rel (0) target = $region13
  $region12: #{conv2d_pallas.1} parent=0 // pred_region
    _
  $region13: #{conv2d_pallas.1} parent=0 // pred_fallthru
    _
  // Predicated region
  $region14: #{conv2d_pallas.1} parent=0 // pred_check
    _
  $region15: #{conv2d_pallas.1} parent=0 // pred_check_branch
    %458 = sbr.rel (0) target = $region17
  $region16: #{conv2d_pallas.1} parent=0 // pred_region
    _
  $region17: #{conv2d_pallas.1} parent=0 // pred_fallthru
    _

</llo_original>
